<compile_context>
chip_gen: v6e
topology: v6e:2x2x1
jax: 0.10.0
libtpu: 0.0.40
codegen_flags: <defaults>
</compile_context>

<pallas_src>
import functools

import jax
import jax.numpy as jnp
from jax.experimental import pallas as pl
from jax.experimental.pallas import tpu as pltpu


def _round_up(x, m):
    return ((x + m - 1) // m) * m


def _attention_kernel(h_ref, enc_ref, wh_ref, we_ref, b_ref, v_ref,
                      out_ref, hh_ref,
                      *, src_len, s_tile, num_tiles, compute_dtype):
    # h_ref:   [B, H]        decoder hidden state (resident; constant block index)
    # enc_ref: [tS, B, H]    S-tile of encoder outputs, original [S, B, H] layout
    # wh_ref:  [H, H]        attn-weight columns acting on hidden
    # we_ref:  [H, H]        attn-weight columns acting on encoder outputs
    # b_ref:   [1, H]        attn bias
    # v_ref:   [1, H]        v weight (row vector)
    # out_ref: [S_pad, B]    resident accumulator; raw scores, then softmax
    # hh_ref:  VMEM [B, H]   hoisted hidden-side projection (h @ Wh + b)
    s = pl.program_id(0)

    # Hoisted, S-independent half of Linear(2H->H): computed exactly once.
    @pl.when(s == 0)
    def _():
        hh = jnp.dot(h_ref[...].astype(compute_dtype),
                     wh_ref[...].astype(compute_dtype),
                     preferred_element_type=jnp.float32)
        hh_ref[...] = hh + b_ref[...]

    enc = enc_ref[...]                                    # [tS, B, H]
    tS, B, H = enc.shape

    # Encoder-side projection on the MXU (optionally bf16 inputs, f32 accum).
    ee = jnp.dot(enc.reshape(tS * B, H).astype(compute_dtype),
                 we_ref[...].astype(compute_dtype),
                 preferred_element_type=jnp.float32).reshape(tS, B, H)
    energy = jnp.tanh(ee + hh_ref[...][None, :, :])       # [tS, B, H], f32

    # Linear(H->1, no bias): VPU multiply + lane reduction (MXU stays free).
    scores = jnp.sum(energy * v_ref[...][None, :, :], axis=-1)   # [tS, B]

    # Stash this tile's raw scores in the resident output block.
    start = pl.multiple_of(s * s_tile, s_tile)
    out_ref[pl.ds(start, s_tile), :] = scores

    # Epilogue: masked, max-subtracted softmax over the whole sequence.
    @pl.when(s == num_tiles - 1)
    def _():
        sc = out_ref[...]                                 # [S_pad, B]
        if sc.shape[0] != src_len:                        # mask padded tail rows
            row = jax.lax.broadcasted_iota(jnp.int32, sc.shape, 0)
            sc = jnp.where(row < src_len, sc, -jnp.inf)
        m = jnp.max(sc, axis=0, keepdims=True)            # [1, B]
        ex = jnp.exp(sc - m)
        out_ref[...] = ex / jnp.sum(ex, axis=0, keepdims=True)


def _choose_s_tile(S, B, H, itemsize, vmem_budget_bytes):
    """Largest S-tile whose double-buffered enc block fits the VMEM budget."""
    bytes_per_row = max(1, B * H * itemsize)
    max_rows = max(8, vmem_budget_bytes // (2 * bytes_per_row))
    if S <= max_rows:
        return _round_up(S, 8)             # single tile covering the sequence
    tile = (max_rows // 128) * 128         # keep multi-tile blocks 128-aligned
    if tile == 0:
        tile = (max_rows // 8) * 8
    return max(8, int(tile))


def attention_forward(hidden, encoder_outputs, w_attn, b_attn, w_v,
                      *, s_tile=None, compute_dtype=jnp.float32,
                      vmem_budget_bytes=8 * 1024 * 1024):
    """hidden: [B, H]; encoder_outputs: [S, B, H] (PyTorch seq-major layout).

    w_attn: [H, 2H] (nn.Linear weight, out x in); b_attn: [H]; w_v: [1, H].
    Returns softmax attention weights of shape [B, S].
    """
    S, B, H = encoder_outputs.shape
    if s_tile is None:
        s_tile = _choose_s_tile(S, B, H, encoder_outputs.dtype.itemsize,
                                vmem_budget_bytes)
    s_tile = max(8, _round_up(int(s_tile), 8))
    num_tiles = pl.cdiv(S, s_tile)
    s_pad = num_tiles * s_tile

    # Split the concat-weight:  cat(h, enc) @ W.T == h @ Wh + enc @ We.
    wh = jnp.transpose(w_attn[:, :H])      # [H_in, H_out]
    we = jnp.transpose(w_attn[:, H:])      # [H_in, H_out]
    b = b_attn.reshape(1, H)
    v = w_v.reshape(1, H)

    kernel = functools.partial(
        _attention_kernel, src_len=S, s_tile=s_tile,
        num_tiles=num_tiles, compute_dtype=compute_dtype)

    cost = pl.CostEstimate(
        flops=2 * s_pad * B * H * H + 2 * B * H * H + 2 * s_pad * B * H,
        transcendentals=s_pad * B * H + s_pad * B,
        bytes_accessed=(S * B * H + 2 * H * H + B * H + 3 * H)
        * encoder_outputs.dtype.itemsize + s_pad * B * 4)

    out = pl.pallas_call(
        kernel,
        out_shape=jax.ShapeDtypeStruct((s_pad, B), jnp.float32),
        grid_spec=pltpu.PrefetchScalarGridSpec(
            num_scalar_prefetch=0,
            grid=(num_tiles,),
            in_specs=[
                pl.BlockSpec((B, H), lambda s: (0, 0)),              # hidden
                pl.BlockSpec((s_tile, B, H), lambda s: (s, 0, 0)),   # enc S-tile
                pl.BlockSpec((H, H), lambda s: (0, 0)),              # Wh
                pl.BlockSpec((H, H), lambda s: (0, 0)),              # We
                pl.BlockSpec((1, H), lambda s: (0, 0)),              # bias
                pl.BlockSpec((1, H), lambda s: (0, 0)),              # v
            ],
            out_specs=pl.BlockSpec((s_pad, B), lambda s: (0, 0)),    # resident acc
            scratch_shapes=[pltpu.VMEM((B, H), jnp.float32)],        # hoisted hh
        ),
        compiler_params=pltpu.CompilerParams(
            dimension_semantics=("arbitrary",),   # softmax accumulates over S
            vmem_limit_bytes=32 * 1024 * 1024,
        ),
        cost_estimate=cost,
    )(hidden, encoder_outputs, wh, we, b, v)

    return jnp.transpose(out[:S, :], (1, 0))     # [B, S]


def attention_reference(hidden, encoder_outputs, w_attn, b_attn, w_v):
    """Pure-JAX reference mirroring the PyTorch module line-by-line."""
    S = encoder_outputs.shape[0]
    h_rep = jnp.repeat(hidden[:, None, :], S, axis=1)        # [B, S, H]
    enc = jnp.transpose(encoder_outputs, (1, 0, 2))          # [B, S, H]
    cat = jnp.concatenate([h_rep, enc], axis=2)              # [B, S, 2H]
    energy = jnp.tanh(cat @ w_attn.T + b_attn)               # [B, S, H]
    attention = (energy @ w_v.T)[..., 0]                     # [B, S]
    return jax.nn.softmax(attention, axis=1)


if __name__ == "__main__":
    root = jax.random.PRNGKey(0)

    def make_inputs(key, B, S, H):
        k_h, k_e, k_wa, k_ba, k_wv = jax.random.split(key, 5)
        hidden = jax.random.normal(k_h, (B, H), dtype=jnp.float32)
        enc = jax.random.normal(k_e, (S, B, H), dtype=jnp.float32)
        bound_a = 1.0 / (2.0 * H) ** 0.5
        bound_v = 1.0 / (1.0 * H) ** 0.5
        w_attn = jax.random.uniform(k_wa, (H, 2 * H), jnp.float32,
                                    -bound_a, bound_a)
        b_attn = jax.random.uniform(k_ba, (H,), jnp.float32, -bound_a, bound_a)
        w_v = jax.random.uniform(k_wv, (1, H), jnp.float32, -bound_v, bound_v)
        return hidden, enc, w_attn, b_attn, w_v

    # Case 1: canonical small shapes (single S-tile path).
    B, S, H = 2, 8, 32
    h1, e1, wa1, ba1, wv1 = make_inputs(root, B, S, H)
    out1 = jax.block_until_ready(attention_forward(h1, e1, wa1, ba1, wv1))
    ref1 = attention_reference(h1, e1, wa1, ba1, wv1)
    assert out1.shape == (B, S)
    assert jnp.allclose(jnp.sum(out1, axis=1), 1.0, atol=1e-5)
    assert jnp.allclose(out1, ref1, atol=2e-5, rtol=2e-5)

    # Case 2: multi-tile grid over S (3 tiles of 128) with a masked padded tail.
    B2, S2, H2 = 4, 300, 32
    k2, _ = jax.random.split(root)
    h2, e2, wa2, ba2, wv2 = make_inputs(k2, B2, S2, H2)
    out2 = jax.block_until_ready(
        attention_forward(h2, e2, wa2, ba2, wv2, s_tile=128))
    ref2 = attention_reference(h2, e2, wa2, ba2, wv2)
    assert out2.shape == (B2, S2)
    assert jnp.allclose(jnp.sum(out2, axis=1), 1.0, atol=1e-5)
    assert jnp.allclose(out2, ref2, atol=2e-5, rtol=2e-5)

    print("KERNEL_OK")
</pallas_src>

<mosaic_0001>
module attributes {stable_mosaic.version = 11 : i64} {
  func.func @_attention_kernel(%arg0: i32, %arg1: memref<2x32xf32, #tpu.memory_space<vmem>>, %arg2: memref<8x2x32xf32, #tpu.memory_space<vmem>>, %arg3: memref<32x32xf32, #tpu.memory_space<vmem>>, %arg4: memref<32x32xf32, #tpu.memory_space<vmem>>, %arg5: memref<1x32xf32, #tpu.memory_space<vmem>>, %arg6: memref<1x32xf32, #tpu.memory_space<vmem>>, %arg7: memref<8x2xf32, #tpu.memory_space<vmem>>, %arg8: memref<2x32xf32, #tpu.memory_space<vmem>>) attributes {dimension_semantics = [#tpu.dimension_semantics<arbitrary>], iteration_bounds = array<i64: 1>, scalar_prefetch = 0 : i64, scratch_operands = 1 : i64, tpu.core_type = #tpu.core_type<tc>, window_params = [{pipeline_mode = #tpu.pipeline_mode<synchronous>, transform_indices = @transform_0, window_bounds = array<i64: 2, 32>}, {transform_indices = @transform_1, window_bounds = array<i64: 8, 2, 32>}, {pipeline_mode = #tpu.pipeline_mode<synchronous>, transform_indices = @transform_2, window_bounds = array<i64: 32, 32>}, {pipeline_mode = #tpu.pipeline_mode<synchronous>, transform_indices = @transform_3, window_bounds = array<i64: 32, 32>}, {pipeline_mode = #tpu.pipeline_mode<synchronous>, transform_indices = @transform_4, window_bounds = array<i64: 1, 32>}, {pipeline_mode = #tpu.pipeline_mode<synchronous>, transform_indices = @transform_5, window_bounds = array<i64: 1, 32>}, {pipeline_mode = #tpu.pipeline_mode<synchronous>, transform_indices = @transform_6, window_bounds = array<i64: 8, 2>}]} {
    %c0_i32 = arith.constant 0 : i32
    %0 = arith.cmpi eq, %arg0, %c0_i32 : i32
    %1 = arith.extui %0 : i1 to i32
    %c0_i32_0 = arith.constant 0 : i32
    %2 = arith.cmpi ne, %1, %c0_i32_0 : i32
    scf.if %2 {
      %c0_13 = arith.constant 0 : index
      %c0_14 = arith.constant 0 : index
      %25 = vector.load %arg1[%c0_13, %c0_14] : memref<2x32xf32, #tpu.memory_space<vmem>>, vector<2x32xf32>
      %c0_15 = arith.constant 0 : index
      %c0_16 = arith.constant 0 : index
      %26 = vector.load %arg3[%c0_15, %c0_16] : memref<32x32xf32, #tpu.memory_space<vmem>>, vector<32x32xf32>
      %cst_17 = arith.constant dense<0.000000e+00> : vector<2x32xf32>
      %27 = tpu.matmul %25, %26, %cst_17 {dimension_numbers = #tpu.dot_dimension_numbers<[1], [0], [0], [1], [0, 0, 1, 1], [], []>} : vector<2x32xf32>, vector<32x32xf32>, vector<2x32xf32> -> vector<2x32xf32>
      %c0_18 = arith.constant 0 : index
      %c0_19 = arith.constant 0 : index
      %28 = vector.load %arg5[%c0_18, %c0_19] : memref<1x32xf32, #tpu.memory_space<vmem>>, vector<1x32xf32>
      %29 = vector.broadcast %28 : vector<1x32xf32> to vector<2x32xf32>
      %30 = arith.addf %27, %29 : vector<2x32xf32>
      %c0_20 = arith.constant 0 : index
      %c0_21 = arith.constant 0 : index
      %31 = vector.load %arg8[%c0_20, %c0_21] : memref<2x32xf32, #tpu.memory_space<vmem>>, vector<2x32xf32>
      tpu.vector_store %arg8[%c0_20, %c0_21], %30 {strides = array<i32>} : memref<2x32xf32, #tpu.memory_space<vmem>>, vector<2x32xf32>,
    } else {
    }
    %c0 = arith.constant 0 : index
    %c0_1 = arith.constant 0 : index
    %c0_2 = arith.constant 0 : index
    %3 = vector.load %arg2[%c0, %c0_1, %c0_2] : memref<8x2x32xf32, #tpu.memory_space<vmem>>, vector<8x2x32xf32>
    %4 = vector.shape_cast %3 : vector<8x2x32xf32> to vector<16x32xf32>
    %c0_3 = arith.constant 0 : index
    %c0_4 = arith.constant 0 : index
    %5 = vector.load %arg4[%c0_3, %c0_4] : memref<32x32xf32, #tpu.memory_space<vmem>>, vector<32x32xf32>
    %cst = arith.constant dense<0.000000e+00> : vector<16x32xf32>
    %6 = tpu.matmul %4, %5, %cst {dimension_numbers = #tpu.dot_dimension_numbers<[1], [0], [0], [1], [0, 0, 1, 1], [], []>} : vector<16x32xf32>, vector<32x32xf32>, vector<16x32xf32> -> vector<16x32xf32>
    %7 = vector.shape_cast %6 : vector<16x32xf32> to vector<8x2x32xf32>
    %c0_5 = arith.constant 0 : index
    %c0_6 = arith.constant 0 : index
    %8 = vector.load %arg8[%c0_5, %c0_6] : memref<2x32xf32, #tpu.memory_space<vmem>>, vector<2x32xf32>
    %9 = vector.shape_cast %8 : vector<2x32xf32> to vector<1x2x32xf32>
    %10 = vector.broadcast %9 : vector<1x2x32xf32> to vector<8x2x32xf32>
    %11 = arith.addf %7, %10 : vector<8x2x32xf32>
    %12 = math.tanh %11 : vector<8x2x32xf32>
    %c0_7 = arith.constant 0 : index
    %c0_8 = arith.constant 0 : index
    %13 = vector.load %arg6[%c0_7, %c0_8] : memref<1x32xf32, #tpu.memory_space<vmem>>, vector<1x32xf32>
    %14 = vector.shape_cast %13 : vector<1x32xf32> to vector<1x1x32xf32>
    %15 = vector.broadcast %14 : vector<1x1x32xf32> to vector<8x2x32xf32>
    %16 = arith.mulf %12, %15 : vector<8x2x32xf32>
    %cst_9 = arith.constant dense<0.000000e+00> : vector<8x2xf32>
    %17 = vector.multi_reduction <add>, %16, %cst_9 [2] : vector<8x2x32xf32> to vector<8x2xf32>
    %c8_i32 = arith.constant 8 : i32
    %18 = arith.muli %arg0, %c8_i32 : i32
    %19 = tpu.assume_multiple %18, 8 : i32
    %20 = arith.index_cast %19 : i32 to index
    %c0_10 = arith.constant 0 : index
    %21 = vector.load %arg7[%20, %c0_10] : memref<8x2xf32, #tpu.memory_space<vmem>>, vector<8x2xf32>
    tpu.vector_store %arg7[%20, %c0_10], %17 {strides = array<i32>} : memref<8x2xf32, #tpu.memory_space<vmem>>, vector<8x2xf32>,
    %c0_i32_11 = arith.constant 0 : i32
    %22 = arith.cmpi eq, %arg0, %c0_i32_11 : i32
    %23 = arith.extui %22 : i1 to i32
    %c0_i32_12 = arith.constant 0 : i32
    %24 = arith.cmpi ne, %23, %c0_i32_12 : i32
    scf.if %24 {
      %c0_13 = arith.constant 0 : index
      %c0_14 = arith.constant 0 : index
      %25 = vector.load %arg7[%c0_13, %c0_14] : memref<8x2xf32, #tpu.memory_space<vmem>>, vector<8x2xf32>
      %cst_15 = arith.constant dense<0xFF800000> : vector<2xf32>
      %26 = vector.multi_reduction <maximumf>, %25, %cst_15 [0] : vector<8x2xf32> to vector<2xf32>
      %27 = vector.shape_cast %26 : vector<2xf32> to vector<1x2xf32>
      %28 = vector.broadcast %27 : vector<1x2xf32> to vector<8x2xf32>
      %29 = arith.subf %25, %28 : vector<8x2xf32>
      %30 = math.exp %29 : vector<8x2xf32>
      %cst_16 = arith.constant dense<0.000000e+00> : vector<2xf32>
      %31 = vector.multi_reduction <add>, %30, %cst_16 [0] : vector<8x2xf32> to vector<2xf32>
      %32 = vector.shape_cast %31 : vector<2xf32> to vector<1x2xf32>
      %33 = vector.broadcast %32 : vector<1x2xf32> to vector<8x2xf32>
      %34 = arith.divf %30, %33 : vector<8x2xf32>
      %c0_17 = arith.constant 0 : index
      %c0_18 = arith.constant 0 : index
      %35 = vector.load %arg7[%c0_17, %c0_18] : memref<8x2xf32, #tpu.memory_space<vmem>>, vector<8x2xf32>
      tpu.vector_store %arg7[%c0_17, %c0_18], %34 {strides = array<i32>} : memref<8x2xf32, #tpu.memory_space<vmem>>, vector<8x2xf32>,
    } else {
    }
    return
  }
  func.func @transform_0(%arg0: i32) -> (i32, i32) {
    %c0_i32 = arith.constant 0 : i32
    %c0_i32_0 = arith.constant 0 : i32
    %c0_i32_1 = arith.constant 0 : i32
    return %c0_i32, %c0_i32_0 : i32, i32
  }
  func.func @transform_1(%arg0: i32) -> (i32, i32, i32) {
    %c0_i32 = arith.constant 0 : i32
    %c0_i32_0 = arith.constant 0 : i32
    %c0_i32_1 = arith.constant 0 : i32
    return %arg0, %c0_i32, %c0_i32_0 : i32, i32, i32
  }
  func.func @transform_2(%arg0: i32) -> (i32, i32) {
    %c0_i32 = arith.constant 0 : i32
    %c0_i32_0 = arith.constant 0 : i32
    %c0_i32_1 = arith.constant 0 : i32
    return %c0_i32, %c0_i32_0 : i32, i32
  }
  func.func @transform_3(%arg0: i32) -> (i32, i32) {
    %c0_i32 = arith.constant 0 : i32
    %c0_i32_0 = arith.constant 0 : i32
    %c0_i32_1 = arith.constant 0 : i32
    return %c0_i32, %c0_i32_0 : i32, i32
  }
  func.func @transform_4(%arg0: i32) -> (i32, i32) {
    %c0_i32 = arith.constant 0 : i32
    %c0_i32_0 = arith.constant 0 : i32
    %c0_i32_1 = arith.constant 0 : i32
    return %c0_i32, %c0_i32_0 : i32, i32
  }
  func.func @transform_5(%arg0: i32) -> (i32, i32) {
    %c0_i32 = arith.constant 0 : i32
    %c0_i32_0 = arith.constant 0 : i32
    %c0_i32_1 = arith.constant 0 : i32
    return %c0_i32, %c0_i32_0 : i32, i32
  }
  func.func @transform_6(%arg0: i32) -> (i32, i32) {
    %c0_i32 = arith.constant 0 : i32
    %c0_i32_0 = arith.constant 0 : i32
    %c0_i32_1 = arith.constant 0 : i32
    return %c0_i32, %c0_i32_0 : i32, i32
  }
}

</mosaic_0001>

<llo_original>
// kernel: tpu_custom_call.1
$region0: #{tpu_custom_call.1}
  #allocation0 [shape = 'u32[]', space=smem, size = 0x4, offset = 0x4, fixed_abs, tag = 'smem constant byte address 0x4 - core index']
  #allocation1 [shape = 'u32[144,128]{1,0:T(1,128)}', space=vmem, size = 0x12000, scoped, tag = 'internal scratch']
  #allocation2 [shape = 'f32[2,32]{1,0:T(2,128)}', space=vmem, size = 0x400, scoped, tag = 'scratch operand']
  %s0 = inlined_call_operand.hbm [shape: f32[2,32], index: 0, kind: input, shape index: {}]
  %s1 = inlined_call_operand.hbm [shape: f32[8,2,32], index: 1, kind: input, shape index: {}]
  %s2 = inlined_call_operand.hbm [shape: f32[32,32], index: 2, kind: input, shape index: {}]
  %s3 = inlined_call_operand.hbm [shape: f32[32,32], index: 3, kind: input, shape index: {}]
  %s4 = inlined_call_operand.vmem [shape: f32[1,32], index: 4, kind: input, shape index: {}]
  %s5 = inlined_call_operand.vmem [shape: f32[1,32], index: 5, kind: input, shape index: {}]
  %s6 = inlined_call_operand.vmem [shape: f32[8,2], index: 6, kind: output, shape index: {}]
  %s7 = sld [smem:[#allocation0]]
  $region58: #{tpu_custom_call.1} parent=0
    _
  %s9 = ssub.s32 1, %s7
  %s10 = scalar_select 0, %s9, %s7
  $region1: #{tpu_custom_call.1} parent=0
    #allocation3 [shape = 'u8[1024]{0}', space=vmem, size = 0x400, scoped, tag = 'input window, operand 0, single buffered']
    #allocation4 [shape = 's32[1]{0}', space=sflag, size = 0x4, scoped, tag = 'scoped memory for tpu_custom_call.1']
    #allocation5 [shape = 'u8[8192]{0}', space=vmem, size = 0x2000, scoped, tag = 'input window, operand 1, single buffered']
    #allocation6 [shape = 's32[1]{0}', space=sflag, size = 0x4, scoped, tag = 'scoped memory for tpu_custom_call.1']
    #allocation7 [shape = 'u8[16384]{0}', space=vmem, size = 0x4000, scoped, tag = 'input window, operand 2, single buffered']
    #allocation8 [shape = 'u8[16384]{0}', space=vmem, size = 0x4000, scoped, tag = 'input window, operand 3, single buffered']
    #allocation9 [shape = 's32[1]{0}', space=sflag, size = 0x4, scoped, tag = 'scoped memory for tpu_custom_call.1']
    %11 = vsyncpa [#allocation4], 0
    %12 = vsyncpa [#allocation6], 0
    %13 = vsyncpa [#allocation9], 0
    // Predicated region
    $region2: #{tpu_custom_call.1} parent=1 // pred_check
      _
    $region3: #{tpu_custom_call.1} parent=1 // pred_check_branch
      %15 = sbr.rel (0) target = $region5
    $region4: #{tpu_custom_call.1} parent=1 // pred_region
      %s17 = ssub.s32 32, 32
      %18 = vsyncadd [#allocation4], %s17
      %s20 = sshll.u32 [#allocation3], 4
      %s21 = int_to_ptr.vmem [resolvable:$true] %s20
      %23 = dma.hbm_to_vmem [thread:$0]  %s0, 32, %s21, [#allocation4]
    $region5: #{tpu_custom_call.1} parent=1 // pred_fallthru
      _
    // Predicated region
    $region6: #{tpu_custom_call.1} parent=1 // pred_check
      _
    $region7: #{tpu_custom_call.1} parent=1 // pred_check_branch
      %25 = sbr.rel (0) target = $region9
    $region8: #{tpu_custom_call.1} parent=1 // pred_region
      %s27 = ssub.s32 256, 256
      %28 = vsyncadd [#allocation6], %s27
      %s29 = sshll.u32 [#allocation5], 4
      %s30 = int_to_ptr.vmem [resolvable:$true] %s29
      %35 = dma.hbm_to_vmem [thread:$0]  %s1, 256, %s30, [#allocation6], 32, 32, 2
    $region9: #{tpu_custom_call.1} parent=1 // pred_fallthru
      _
    // Predicated region
    $region10: #{tpu_custom_call.1} parent=1 // pred_check
      _
    $region11: #{tpu_custom_call.1} parent=1 // pred_check_branch
      %37 = sbr.rel (0) target = $region13
    $region12: #{tpu_custom_call.1} parent=1 // pred_region
      %s39 = ssub.s32 512, 512
      %40 = vsyncadd [#allocation6], %s39
      %s41 = sshll.u32 [#allocation7], 4
      %s42 = int_to_ptr.vmem [resolvable:$true] %s41
      %47 = dma.hbm_to_vmem [thread:$0]  %s2, 512, %s42, [#allocation6], 128, 128, 8
    $region13: #{tpu_custom_call.1} parent=1 // pred_fallthru
      _
    // Predicated region
    $region14: #{tpu_custom_call.1} parent=1 // pred_check
      _
    $region15: #{tpu_custom_call.1} parent=1 // pred_check_branch
      %49 = sbr.rel (0) target = $region17
    $region16: #{tpu_custom_call.1} parent=1 // pred_region
      %s51 = ssub.s32 512, 512
      %52 = vsyncadd [#allocation9], %s51
      %s53 = sshll.u32 [#allocation8], 4
      %s54 = int_to_ptr.vmem [resolvable:$true] %s53
      %59 = dma.hbm_to_vmem [thread:$0]  %s3, 512, %s54, [#allocation9], 128, 128, 8
    $region17: #{tpu_custom_call.1} parent=1 // pred_fallthru
      _
    // Predicated region
    $region18: #{tpu_custom_call.1} parent=1 // pred_check
      _
    $region19: #{tpu_custom_call.1} parent=1 // pred_check_branch
      %61 = sbr.rel (0) target = $region21
    $region20: #{tpu_custom_call.1} parent=1 // pred_region
      _
    $region21: #{tpu_custom_call.1} parent=1 // pred_fallthru
      _
    // Predicated region
    $region22: #{tpu_custom_call.1} parent=1 // pred_check
      _
    $region23: #{tpu_custom_call.1} parent=1 // pred_check_branch
      %63 = sbr.rel (0) target = $region25
    $region24: #{tpu_custom_call.1} parent=1 // pred_region
      _
    $region25: #{tpu_custom_call.1} parent=1 // pred_fallthru
      _
    // Predicated region
    $region26: #{tpu_custom_call.1} parent=1 // pred_check
      _
    $region27: #{tpu_custom_call.1} parent=1 // pred_check_branch
      %65 = sbr.rel (0) target = $region29
    $region28: #{tpu_custom_call.1} parent=1 // pred_region
      %66 = dma.done [#allocation4], 32
    $region29: #{tpu_custom_call.1} parent=1 // pred_fallthru
      _
    // Predicated region
    $region30: #{tpu_custom_call.1} parent=1 // pred_check
      _
    $region31: #{tpu_custom_call.1} parent=1 // pred_check_branch
      %68 = sbr.rel (0) target = $region33
    $region32: #{tpu_custom_call.1} parent=1 // pred_region
      %69 = dma.done [#allocation6], 256
    $region33: #{tpu_custom_call.1} parent=1 // pred_fallthru
      _
    // Predicated region
    $region34: #{tpu_custom_call.1} parent=1 // pred_check
      _
    $region35: #{tpu_custom_call.1} parent=1 // pred_check_branch
      %71 = sbr.rel (0) target = $region37
    $region36: #{tpu_custom_call.1} parent=1 // pred_region
      %72 = dma.done [#allocation6], 512
    $region37: #{tpu_custom_call.1} parent=1 // pred_fallthru
      _
    // Predicated region
    $region38: #{tpu_custom_call.1} parent=1 // pred_check
      _
    $region39: #{tpu_custom_call.1} parent=1 // pred_check_branch
      %74 = sbr.rel (0) target = $region41
    $region40: #{tpu_custom_call.1} parent=1 // pred_region
      %75 = dma.done [#allocation9], 512
    $region41: #{tpu_custom_call.1} parent=1 // pred_fallthru
      _
    %p76 = scmp.eq.s32.totalorder 0, 0
    // Predicated region
    $region42: #{tpu_custom_call.1} parent=1 // pred_check
      %p77 = pneg %p76
    $region43: #{tpu_custom_call.1} parent=1 // pred_check_branch
      %79 = sbr.rel (%p77) target = $region45
    $region44: #{tpu_custom_call.1} parent=1 // pred_region
      %v80 = vld [vmem:[#allocation3] sm:$0x3]
      %v81 = vld [vmem:[#allocation7] sm:$0xff]
      %v82 = vld [vmem:[#allocation7 + $0x8] sm:$0xff]
      %v83 = vld [vmem:[#allocation7 + $0x10] sm:$0xff]
      %v84 = vld [vmem:[#allocation7 + $0x18] sm:$0xff]
      %v85 = vld [vmem:[%s4] sm:$0x1]
      %v87 = vlaneseq
      %v88 = vshrl.u32 %v87, 7
      %v89 = vsub.s32 0, %v88
      %v90 = vrot.slane %v85, %v89
      %vm92 = vcmask 261120
      %v94 = vsel %vm92, %v80, 0
      %96 = vmatprep.subr.mxu0 0.0
      %97 = vmatpush1.msra.mxu0 0.0
      %98 = vmatprep.subr.mxu0 0.0
      %99 = vmatpush1.msra.mxu0 0.0
      %100 = vmatprep.subr.mxu0 0.0
      %101 = vmatpush1.msra.mxu0 0.0
      %102 = vmatprep.subr.mxu0 0.0
      %103 = vmatpush1.msra.mxu0 0.0
      %104 = vmatprep.subr.mxu0 0.0
      %105 = vmatpush1.msra.mxu0 0.0
      %106 = vmatprep.subr.mxu0 0.0
      %107 = vmatpush1.msra.mxu0 0.0
      %108 = vmatprep.subr.mxu0 0.0
      %109 = vmatpush1.msra.mxu0 0.0
      %110 = vmatprep.subr.mxu0 0.0
      %111 = vmatpush1.msra.mxu0 0.0
      %112 = vmatprep.subr.mxu0 0.0
      %113 = vmatpush1.msra.mxu0 0.0
      %114 = vmatprep.subr.mxu0 0.0
      %115 = vmatpush1.msra.mxu0 0.0
      %116 = vmatprep.subr.mxu0 0.0
      %117 = vmatpush1.msra.mxu0 0.0
      %118 = vmatprep.subr.mxu0 0.0
      %119 = vmatpush1.msra.mxu0 0.0
      %120 = vmatprep.subr.mxu0 0.0
      %121 = vmatpush1.msra.mxu0 %v84
      %122 = vmatprep.subr.mxu0 0.0
      %123 = vmatpush1.msra.mxu0 %v83
      %124 = vmatprep.subr.mxu0 0.0
      %125 = vmatpush1.msra.mxu0 %v82
      %126 = vmatprep.subr.mxu0 0.0
      %127 = vmatpush1.msra.mxu0 %v81
      %128 = vmatprep.subr.mxu0 0.0
      %129 = vmatpush2.msra.mxu0 0.0
      %130 = vmatprep.subr.mxu0 0.0
      %131 = vmatpush2.msra.mxu0 0.0
      %132 = vmatprep.subr.mxu0 0.0
      %133 = vmatpush2.msra.mxu0 0.0
      %134 = vmatprep.subr.mxu0 0.0
      %135 = vmatpush2.msra.mxu0 0.0
      %136 = vmatprep.subr.mxu0 0.0
      %137 = vmatpush2.msra.mxu0 0.0
      %138 = vmatprep.subr.mxu0 0.0
      %139 = vmatpush2.msra.mxu0 0.0
      %140 = vmatprep.subr.mxu0 0.0
      %141 = vmatpush2.msra.mxu0 0.0
      %142 = vmatprep.subr.mxu0 0.0
      %143 = vmatpush2.msra.mxu0 0.0
      %144 = vmatprep.subr.mxu0 0.0
      %145 = vmatpush2.msra.mxu0 0.0
      %146 = vmatprep.subr.mxu0 0.0
      %147 = vmatpush2.msra.mxu0 0.0
      %148 = vmatprep.subr.mxu0 0.0
      %149 = vmatpush2.msra.mxu0 0.0
      %150 = vmatprep.subr.mxu0 0.0
      %151 = vmatpush2.msra.mxu0 0.0
      %152 = vmatprep.subr.mxu0 0.0
      %153 = vmatpush2.msra.mxu0 0.0
      %154 = vmatprep.subr.mxu0 0.0
      %155 = vmatpush2.msra.mxu0 0.0
      %156 = vmatprep.subr.mxu0 0.0
      %157 = vmatpush2.msra.mxu0 0.0
      %158 = vmatprep.subr.mxu0 0.0
      %159 = vmatpush2.msra.mxu0 0.0
      %160 = vmatprep.mubr.f32.mxu0 0.0
      %161 = vmatmul.mubr.f32.gmra.mxu0 %v94
      %v162 = vpop.f32.mrf.mxu0
      %v163 = vadd.f32 %v90, %v162
      %v164 = vpop.f32.mrf.mxu0
      %165 = vdwg.mxu0
      %vm166 = vcmask 254976
      %167 = vst.msk [vmem:[#allocation2] sm:$0x3] %vm166, %v163
    $region45: #{tpu_custom_call.1} parent=1 // pred_fallthru
      _
    %v168 = vld [vmem:[#allocation5] sm:$0x3]
    %v169 = vld [vmem:[#allocation5 + $0x2] sm:$0x3]
    %v170 = vld [vmem:[#allocation5 + $0x4] sm:$0x3]
    %v171 = vld [vmem:[#allocation5 + $0x6] sm:$0x3]
    %v172 = vld [vmem:[#allocation5 + $0x8] sm:$0x3]
    %v173 = vld [vmem:[#allocation5 + $0xa] sm:$0x3]
    %v174 = vld [vmem:[#allocation5 + $0xc] sm:$0x3]
    %v175 = vld [vmem:[#allocation5 + $0xe] sm:$0x3]
    %v176 = vld [vmem:[#allocation8] sm:$0xff]
    %v177 = vld [vmem:[#allocation8 + $0x8] sm:$0xff]
    %v178 = vld [vmem:[#allocation8 + $0x10] sm:$0xff]
    %v179 = vld [vmem:[#allocation8 + $0x18] sm:$0xff]
    %v188 = vcombine.low %v168, %v169
    %v189 = vcombine.low %v170, %v171
    %v191 = vunpack.c.l.s4 1983009808
    %v192 = vunpack.c.0.s8 %v191
    %v193 = vlaneseq
    %v194 = vshrl.u32 %v193, 7
    %v195 = vsub.s32 %v192, %v194
    %v196 = vrot.slane %v188, %v195
    %v198 = vunpack.c.l.s4 1983009808
    %v199 = vunpack.c.0.s8 %v198
    %v200 = vlaneseq
    %v201 = vshrl.u32 %v200, 7
    %v202 = vsub.s32 %v199, %v201
    %v203 = vrot.slane %v189, %v202
    %v204 = vcombine.low %v196, %v203
    %v205 = vcombine.low %v172, %v173
    %v206 = vcombine.low %v174, %v175
    %v208 = vunpack.c.l.s4 1983009808
    %v209 = vunpack.c.0.s8 %v208
    %v210 = vlaneseq
    %v211 = vshrl.u32 %v210, 7
    %v212 = vsub.s32 %v209, %v211
    %v213 = vrot.slane %v205, %v212
    %v215 = vunpack.c.l.s4 1983009808
    %v216 = vunpack.c.0.s8 %v215
    %v217 = vlaneseq
    %v218 = vshrl.u32 %v217, 7
    %v219 = vsub.s32 %v216, %v218
    %v220 = vrot.slane %v206, %v219
    %v221 = vcombine.low %v213, %v220
    %vm222 = vcmask 261120
    %v223 = vsel %vm222, %v204, 0
    %v225 = vsel %vm222, %v221, 0
    %227 = vmatprep.subr.mxu0 0.0
    %228 = vmatpush1.msra.mxu0 0.0
    %229 = vmatprep.subr.mxu0 0.0
    %230 = vmatpush1.msra.mxu0 0.0
    %231 = vmatprep.subr.mxu0 0.0
    %232 = vmatpush1.msra.mxu0 0.0
    %233 = vmatprep.subr.mxu0 0.0
    %234 = vmatpush1.msra.mxu0 0.0
    %235 = vmatprep.subr.mxu0 0.0
    %236 = vmatpush1.msra.mxu0 0.0
    %237 = vmatprep.subr.mxu0 0.0
    %238 = vmatpush1.msra.mxu0 0.0
    %239 = vmatprep.subr.mxu0 0.0
    %240 = vmatpush1.msra.mxu0 0.0
    %241 = vmatprep.subr.mxu0 0.0
    %242 = vmatpush1.msra.mxu0 0.0
    %243 = vmatprep.subr.mxu0 0.0
    %244 = vmatpush1.msra.mxu0 0.0
    %245 = vmatprep.subr.mxu0 0.0
    %246 = vmatpush1.msra.mxu0 0.0
    %247 = vmatprep.subr.mxu0 0.0
    %248 = vmatpush1.msra.mxu0 0.0
    %249 = vmatprep.subr.mxu0 0.0
    %250 = vmatpush1.msra.mxu0 0.0
    %251 = vmatprep.subr.mxu0 0.0
    %252 = vmatpush1.msra.mxu0 %v179
    %253 = vmatprep.subr.mxu0 0.0
    %254 = vmatpush1.msra.mxu0 %v178
    %255 = vmatprep.subr.mxu0 0.0
    %256 = vmatpush1.msra.mxu0 %v177
    %257 = vmatprep.subr.mxu0 0.0
    %258 = vmatpush1.msra.mxu0 %v176
    %259 = vmatprep.subr.mxu0 0.0
    %260 = vmatpush2.msra.mxu0 0.0
    %261 = vmatprep.subr.mxu0 0.0
    %262 = vmatpush2.msra.mxu0 0.0
    %263 = vmatprep.subr.mxu0 0.0
    %264 = vmatpush2.msra.mxu0 0.0
    %265 = vmatprep.subr.mxu0 0.0
    %266 = vmatpush2.msra.mxu0 0.0
    %267 = vmatprep.subr.mxu0 0.0
    %268 = vmatpush2.msra.mxu0 0.0
    %269 = vmatprep.subr.mxu0 0.0
    %270 = vmatpush2.msra.mxu0 0.0
    %271 = vmatprep.subr.mxu0 0.0
    %272 = vmatpush2.msra.mxu0 0.0
    %273 = vmatprep.subr.mxu0 0.0
    %274 = vmatpush2.msra.mxu0 0.0
    %275 = vmatprep.subr.mxu0 0.0
    %276 = vmatpush2.msra.mxu0 0.0
    %277 = vmatprep.subr.mxu0 0.0
    %278 = vmatpush2.msra.mxu0 0.0
    %279 = vmatprep.subr.mxu0 0.0
    %280 = vmatpush2.msra.mxu0 0.0
    %281 = vmatprep.subr.mxu0 0.0
    %282 = vmatpush2.msra.mxu0 0.0
    %283 = vmatprep.subr.mxu0 0.0
    %284 = vmatpush2.msra.mxu0 0.0
    %285 = vmatprep.subr.mxu0 0.0
    %286 = vmatpush2.msra.mxu0 0.0
    %287 = vmatprep.subr.mxu0 0.0
    %288 = vmatpush2.msra.mxu0 0.0
    %289 = vmatprep.subr.mxu0 0.0
    %290 = vmatpush2.msra.mxu0 0.0
    %291 = vmatprep.mubr.f32.mxu0 0.0
    %292 = vmatmul.mubr.f32.gmra.mxu0 %v223
    %v293 = vpop.f32.mrf.mxu0
    %v294 = vadd.f32 0.0, %v293
    %v295 = vpop.f32.mrf.mxu0
    %296 = vmatprep.mubr.f32.mxu0 0.0
    %297 = vmatmul.mubr.f32.gmra.mxu0 %v225
    %v298 = vpop.f32.mrf.mxu0
    %v299 = vadd.f32 0.0, %v298
    %v300 = vpop.f32.mrf.mxu0
    %301 = vdwg.mxu0
    %v304 = vcombine.high %v294, %v294
    %v306 = vunpack.c.l.s4 1983009808
    %v307 = vunpack.c.0.s8 %v306
    %v308 = vlaneseq
    %v309 = vshrl.u32 %v308, 7
    %v310 = vsub.s32 %v307, %v309
    %v311 = vrot.slane %v294, %v310
    %v313 = vunpack.c.l.s4 1983009808
    %v314 = vunpack.c.0.s8 %v313
    %v315 = vlaneseq
    %v316 = vshrl.u32 %v315, 7
    %v317 = vsub.s32 %v314, %v316
    %v318 = vrot.slane %v304, %v317
    %v319 = vcombine.high %v311, %v311
    %v320 = vcombine.high %v318, %v318
    %v321 = vcombine.high %v299, %v299
    %v323 = vunpack.c.l.s4 1983009808
    %v324 = vunpack.c.0.s8 %v323
    %v325 = vlaneseq
    %v326 = vshrl.u32 %v325, 7
    %v327 = vsub.s32 %v324, %v326
    %v328 = vrot.slane %v299, %v327
    %v330 = vunpack.c.l.s4 1983009808
    %v331 = vunpack.c.0.s8 %v330
    %v332 = vlaneseq
    %v333 = vshrl.u32 %v332, 7
    %v334 = vsub.s32 %v331, %v333
    %v335 = vrot.slane %v321, %v334
    %v336 = vcombine.high %v328, %v328
    %v337 = vcombine.high %v335, %v335
    %v346 = vld [vmem:[#allocation2] sm:$0x3]
    %v347 = vadd.f32 %v311, %v346
    %v348 = vadd.f32 %v319, %v346
    %v349 = vadd.f32 %v318, %v346
    %v350 = vadd.f32 %v320, %v346
    %v351 = vadd.f32 %v328, %v346
    %v352 = vadd.f32 %v336, %v346
    %v353 = vadd.f32 %v335, %v346
    %v354 = vadd.f32 %v337, %v346
    %v355 = vtanh.pop %v347
    %v356 = vtanh.pop %v348
    %v357 = vtanh.pop %v349
    %v358 = vtanh.pop %v350
    %v359 = vtanh.pop %v351
    %v360 = vtanh.pop %v352
    %v361 = vtanh.pop %v353
    %v362 = vtanh.pop %v354
    %v363 = vld [vmem:[%s5] sm:$0x1]
    %v365 = vlaneseq
    %v366 = vshrl.u32 %v365, 7
    %v367 = vsub.s32 0, %v366
    %v368 = vrot.slane %v363, %v367
    %v370 = vmul.f32 %v355, %v368
    %v371 = vmul.f32 %v356, %v368
    %v372 = vmul.f32 %v357, %v368
    %v373 = vmul.f32 %v358, %v368
    %v374 = vmul.f32 %v359, %v368
    %v375 = vmul.f32 %v360, %v368
    %v376 = vmul.f32 %v361, %v368
    %v377 = vmul.f32 %v362, %v368
    %vm378 = vcmask 254976
    %v379 = vsel %vm378, %v370, 0.0
    %380 = vadd.xlane.f32.xlu0 %v379
    %v381 = vpop.xlane.xlu0 %380
    %v382 = vsel %vm378, %v371, 0.0
    %383 = vadd.xlane.f32.xlu0 %v382
    %v384 = vpop.xlane.xlu0 %383
    %v385 = vsel %vm378, %v372, 0.0
    %386 = vadd.xlane.f32.xlu0 %v385
    %v387 = vpop.xlane.xlu0 %386
    %v388 = vsel %vm378, %v373, 0.0
    %389 = vadd.xlane.f32.xlu0 %v388
    %v390 = vpop.xlane.xlu0 %389
    %v391 = vsel %vm378, %v374, 0.0
    %392 = vadd.xlane.f32.xlu0 %v391
    %v393 = vpop.xlane.xlu0 %392
    %v394 = vsel %vm378, %v375, 0.0
    %395 = vadd.xlane.f32.xlu0 %v394
    %v396 = vpop.xlane.xlu0 %395
    %v397 = vsel %vm378, %v376, 0.0
    %398 = vadd.xlane.f32.xlu0 %v397
    %v399 = vpop.xlane.xlu0 %398
    %v400 = vsel %vm378, %v377, 0.0
    %401 = vadd.xlane.f32.xlu0 %v400
    %v402 = vpop.xlane.xlu0 %401
    %s403 = smul.u32 0, 8
    %v412 = vlaneseq
    %v413 = vand.u32 %v412, 127
    %v414 = vlaneseq
    %v415 = vshrl.u32 %v414, 7
    %v416 = vsub.s32 %v413, %v415
    %v417 = vrot.slane %v381, %v416
    %v418 = vlaneseq
    %v419 = vshrl.u32 %v418, 7
    %v420 = vsub.s32 %v413, %v419
    %v421 = vrot.slane %v384, %v420
    %v422 = vlaneseq
    %v423 = vshrl.u32 %v422, 7
    %v424 = vsub.s32 %v413, %v423
    %v425 = vrot.slane %v387, %v424
    %v426 = vlaneseq
    %v427 = vshrl.u32 %v426, 7
    %v428 = vsub.s32 %v413, %v427
    %v429 = vrot.slane %v390, %v428
    %v430 = vlaneseq
    %v431 = vshrl.u32 %v430, 7
    %v432 = vsub.s32 %v413, %v431
    %v433 = vrot.slane %v393, %v432
    %v434 = vlaneseq
    %v435 = vshrl.u32 %v434, 7
    %v436 = vsub.s32 %v413, %v435
    %v437 = vrot.slane %v396, %v436
    %v438 = vlaneseq
    %v439 = vshrl.u32 %v438, 7
    %v440 = vsub.s32 %v413, %v439
    %v441 = vrot.slane %v399, %v440
    %v442 = vlaneseq
    %v443 = vshrl.u32 %v442, 7
    %v444 = vsub.s32 %v413, %v443
    %v445 = vrot.slane %v402, %v444
    %vm446 = vcmask 1041409
    %v447 = vsel %vm446, %v421, %v417
    %vm448 = vcmask 1042434
    %v449 = vsel %vm448, %v425, %v447
    %vm450 = vcmask 1043459
    %v451 = vsel %vm450, %v429, %v449
    %vm452 = vcmask 1044484
    %v453 = vsel %vm452, %v433, %v451
    %vm454 = vcmask 1045509
    %v455 = vsel %vm454, %v437, %v453
    %vm456 = vcmask 1046534
    %v457 = vsel %vm456, %v441, %v455
    %vm458 = vcmask 1047559
    %v459 = vsel %vm458, %v445, %v457
    %s461 = scalar_lea.vmem %s6, %s403
    %vm462 = vcmask 15360
    %463 = vst.msk [vmem:[%s461] sm:$0xff] %vm462, %v459
    // Predicated region
    $region46: #{tpu_custom_call.1} parent=1 // pred_check
      %p464 = pneg %p76
    $region47: #{tpu_custom_call.1} parent=1 // pred_check_branch
      %466 = sbr.rel (%p464) target = $region49
    $region48: #{tpu_custom_call.1} parent=1 // pred_region
      %v467 = vld [vmem:[%s6] sm:$0xff]
      %v468 = vsel %vm462, %v467, -inf
      %v469 = vrot.slane %v468, 4
      %v470 = vmax.f32 %v468, %v469
      %v471 = vrot.slane %v470, 2
      %v472 = vmax.f32 %v470, %v471
      %v473 = vrot.slane %v472, 1
      %v474 = vmax.f32 %v472, %v473
      %v475 = vsub.f32 %v467, %v474
      %v476 = vmul.f32 %v475, 1.442695
      %v477 = vpow.pop %v476
      %v478 = vsel %vm462, %v477, 0.0
      %v479 = vrot.slane %v478, 4
      %v480 = vadd.f32 %v478, %v479
      %v481 = vrot.slane %v480, 2
      %v482 = vadd.f32 %v480, %v481
      %v483 = vrot.slane %v482, 1
      %v484 = vadd.f32 %v482, %v483
      %v485 = vrcp.pop %v484
      %v486 = vmul.f32 %v477, %v485
      %487 = vst.msk [vmem:[%s6] sm:$0xff] %vm462, %v486
    $region49: #{tpu_custom_call.1} parent=1 // pred_fallthru
      _
    // Predicated region
    $region50: #{tpu_custom_call.1} parent=1 // pred_check
      _
    $region51: #{tpu_custom_call.1} parent=1 // pred_check_branch
      %489 = sbr.rel (0) target = $region53
    $region52: #{tpu_custom_call.1} parent=1 // pred_region
      _
    $region53: #{tpu_custom_call.1} parent=1 // pred_fallthru
      _
    // Predicated region
    $region54: #{tpu_custom_call.1} parent=1 // pred_check
      _
    $region55: #{tpu_custom_call.1} parent=1 // pred_check_branch
      %491 = sbr.rel (0) target = $region57
    $region56: #{tpu_custom_call.1} parent=1 // pred_region
      _
    $region57: #{tpu_custom_call.1} parent=1 // pred_fallthru
      _
    %492 = vsyncpa [#allocation4], 1
    %493 = vsyncpa [#allocation6], 1
    %494 = vsyncpa [#allocation9], 1

</llo_original>
